<compile_context>
chip_gen: v7x
topology: tpu7x:2x2x1
jax: 0.10.0
libtpu: 0.0.40
codegen_flags: <defaults>
</compile_context>

<pallas_src>
import jax
import jax.numpy as jnp
import numpy as np
from jax.experimental import pallas as pl
from jax.experimental.pallas import tpu as pltpu

LANE = 128  # one lane tile: gate blocks and the [h|x] lane width are padded to this


# ----------------------------- Pallas kernel ---------------------------------
def tgcn_cell_kernel(hx_ref, lap_ref, wbig_ref, w2h_ref, b_ref, out_ref):
    """Single grid step: the whole (batch-folded) TGCN cell update.

    hx_ref  : (B*N, 128)  f32   batches stacked on sublanes, lanes = [h | x | 0-pad]
    lap_ref : (B*N, B*N)  bf16  block-diagonal normalized laplacian (kron(I_B, lap))
    wbig_ref: (128, 384)  bf16  [W_r | W_u | W2_x], each block 128-lane aligned
    w2h_ref : (H,   128)  bf16  W2 rows for the r*h term, columns zero-padded to 128
    b_ref   : (1,   384)  f32   [b_r | b_u | b2], 128-lane aligned
    out_ref : (B*N, 128)  f32   new hidden state in lanes [0:H]; lanes >= H don't-care
    """
    hidden = w2h_ref.shape[0]

    hx_f32 = hx_ref[...]                      # exact f32 h for the elementwise mix
    hx_bf = hx_f32.astype(jnp.bfloat16)       # bf16 copy for the MXU
    lap = lap_ref[...]
    wbig = wbig_ref[...]
    w2h = w2h_ref[...]
    bias = b_ref[...]

    # 1) Graph propagation of [h|x] for ALL batches: one MXU push (bf16 in, f32 acc).
    lhx = jnp.dot(lap, hx_bf, preferred_element_type=jnp.float32)        # (BN, 128)

    # 2) Fused gate matmul: [ r_pre | u_pre | (lap@x)@W2_x ] with 128-aligned blocks;
    #    one broadcast bias add for the whole batch.
    g = jnp.dot(lhx.astype(jnp.bfloat16), wbig,
                preferred_element_type=jnp.float32) + bias               # (BN, 384)

    r = jax.nn.sigmoid(g[:, 0:hidden])                                   # (BN, H)
    u = jax.nn.sigmoid(g[:, LANE:2 * LANE])                              # (BN, 128)

    # 3) Candidate: lap @ (r*h) @ W2_h (data-dependent on r, cannot be pre-fused).
    rh = (r * hx_f32[:, 0:hidden]).astype(jnp.bfloat16)                  # (BN, H)
    lrh = jnp.dot(lap, rh, preferred_element_type=jnp.float32)           # (BN, H)
    c = jnp.tanh(g[:, 2 * LANE:3 * LANE]
                 + jnp.dot(lrh.astype(jnp.bfloat16), w2h,
                           preferred_element_type=jnp.float32))          # (BN, 128)

    # 4) GRU-style mix; full 128-lane unmasked store (lanes >= H are don't-care and
    #    get sliced off in the wrapper).
    out_ref[...] = u * hx_f32 + (1.0 - u) * c


# ----------------------------- wrapper (glue) ---------------------------------
def tgcn_cell_forward(x, h, lap, w1, b1, w2, b2):
    """x: (B,N,F) f32, h: (B,N,H) f32, lap: (N,N), w1: (F+H, 2H), b1: (2H,),
    w2: (F+H, H), b2: (H,). Returns the new hidden state (B,N,H)."""
    B, N, F = x.shape
    H = h.shape[-1]
    BN = B * N
    HF = H + F
    assert HF <= LANE and H <= LANE, "this small-shape kernel assumes H+F <= 128"

    # --- operand packing (plain-JAX glue, done once per call) ---
    # Batches stacked on sublanes; [h | x] on lanes so the h slice starts at lane 0;
    # zero-padded to one full 128-lane tile (also makes the output lane-dense).
    hx = jnp.concatenate([h, x], axis=-1).reshape(BN, HF).astype(jnp.float32)
    hx = jnp.pad(hx, ((0, 0), (0, LANE - HF)))                           # (BN, 128)

    # Block-diagonal laplacian -> graph propagation of the whole batch is one matmul.
    lap_blk = jnp.kron(jnp.eye(B, dtype=jnp.float32),
                       lap.astype(jnp.float32)).astype(jnp.bfloat16)     # (BN, BN)

    # W1 reordered to the [h | x] layout; W2's x-rows become a third gate block
    # (its h-rows are zero because lap@(r*h) goes through the separate W2_h matmul).
    w1_r = jnp.concatenate([w1[F:, :], w1[:F, :]], axis=0)               # (HF, 2H)
    w2_x = jnp.concatenate([jnp.zeros((H, H), w2.dtype), w2[:F, :]],
                           axis=0)                                       # (HF, H)

    def gate_block(wcol):  # (HF, <=128) -> (128, 128): pad K rows and gate lanes
        return jnp.pad(wcol, ((0, LANE - HF), (0, LANE - wcol.shape[1])))

    w_big = jnp.concatenate(
        [gate_block(w1_r[:, :H]), gate_block(w1_r[:, H:]), gate_block(w2_x)],
        axis=1).astype(jnp.bfloat16)                                     # (128, 384)
    w2_h = jnp.pad(w2[F:, :], ((0, 0), (0, LANE - H))).astype(jnp.bfloat16)  # (H,128)

    b_cat = jnp.concatenate(
        [jnp.pad(b1[:H], (0, LANE - H)),
         jnp.pad(b1[H:], (0, LANE - H)),
         jnp.pad(b2, (0, LANE - H))]).reshape(1, 3 * LANE).astype(jnp.float32)

    full = lambda shape: pl.BlockSpec(shape, lambda i, _s=shape: (0,) * len(_s))

    grid_spec = pltpu.PrefetchScalarGridSpec(
        num_scalar_prefetch=0,
        grid=(1,),  # tiny problem: one step, everything resident in VMEM
        in_specs=[
            full((BN, LANE)),           # hx
            full((BN, BN)),             # block-diag laplacian
            full((LANE, 3 * LANE)),     # W_big
            full((H, LANE)),            # W2_h
            full((1, 3 * LANE)),        # b_cat
        ],
        out_specs=full((BN, LANE)),
    )

    out_pad = pl.pallas_call(
        tgcn_cell_kernel,
        out_shape=jax.ShapeDtypeStruct((BN, LANE), jnp.float32),
        grid_spec=grid_spec,
        compiler_params=pltpu.CompilerParams(
            dimension_semantics=("arbitrary",)),
    )(hx, lap_blk, w_big, w2_h, b_cat)

    # Lane-dense kernel output -> user layout.
    return out_pad[:, :H].reshape(B, N, H)


# ----------------------------- plain-JAX helpers ------------------------------
def laplacian_matrix(adj):
    """Symmetric-normalized Laplacian, mirrors TGCNGraphConv.get_laplacian_matrix."""
    n = adj.shape[0]
    a = adj + jnp.eye(n, dtype=jnp.float32)
    row_sum = jnp.sum(a, axis=1)
    d_inv_sqrt = jnp.power(row_sum, -0.5)
    d_inv_sqrt = jnp.where(jnp.isinf(d_inv_sqrt), 0.0, d_inv_sqrt)
    d = jnp.diag(d_inv_sqrt)
    return d @ a @ d


def xavier_uniform(key, shape):
    fan_in, fan_out = shape
    bound = float(np.sqrt(6.0 / (fan_in + fan_out)))
    return jax.random.uniform(key, shape, jnp.float32, -bound, bound)


def ref_tgcn_cell(x, h, lap, w1, b1, w2, b2):
    """Pure-JAX f32 reference matching the PyTorch forward semantics."""
    def graph_conv(xi, hi, w, b):
        cat = jnp.concatenate([xi, hi], axis=-1)             # (B, N, F+H)
        ax = jnp.einsum('nm,bmk->bnk', lap, cat)             # laplacian per batch
        return ax @ w + b
    g = jax.nn.sigmoid(graph_conv(x, h, w1, b1))
    r, u = jnp.split(g, 2, axis=-1)
    c = jnp.tanh(graph_conv(x, r * h, w2, b2))
    return u * h + (1.0 - u) * c


# ----------------------------------- main --------------------------------------
if __name__ == "__main__":
    B, N, F, H = 2, 16, 4, 32   # batch, num_nodes, input_dim, hidden_dim

    key = jax.random.PRNGKey(0)
    k_adj, k_x, k_h, k_w1, k_w2 = jax.random.split(key, 5)

    # Deterministic synthetic symmetric adjacency (no self loops; laplacian adds I).
    a = jax.random.bernoulli(k_adj, p=0.3, shape=(N, N)).astype(jnp.float32)
    adj = jnp.maximum(a, a.T) * (1.0 - jnp.eye(N, dtype=jnp.float32))
    lap = laplacian_matrix(adj)

    # Parameters (match TGCNCell.__init__ shapes / inits).
    w1 = xavier_uniform(k_w1, (F + H, 2 * H))   # graph_conv1 weights
    b1 = jnp.full((2 * H,), 1.0, jnp.float32)   # graph_conv1 bias init = 1.0
    w2 = xavier_uniform(k_w2, (F + H, H))       # graph_conv2 weights
    b2 = jnp.zeros((H,), jnp.float32)           # graph_conv2 bias init = 0.0

    x = jax.random.normal(k_x, (B, N, F), jnp.float32)
    h = jax.random.normal(k_h, (B, N, H), jnp.float32)

    new_h = tgcn_cell_forward(x, h, lap, w1, b1, w2, b2)
    new_h = jax.block_until_ready(new_h)

    ref = jax.block_until_ready(ref_tgcn_cell(x, h, lap, w1, b1, w2, b2))
    # Tolerance reflects bf16 MXU operands (f32 accumulation) vs. the all-f32 reference.
    np.testing.assert_allclose(np.asarray(new_h), np.asarray(ref), rtol=2e-2, atol=2e-2)

    print("KERNEL_OK")
</pallas_src>

<mosaic_0001>
module attributes {stable_mosaic.version = 11 : i64} {
  func.func @tgcn_cell_kernel(%arg0: i32, %arg1: memref<32x128xf32, #tpu.memory_space<vmem>>, %arg2: memref<32x32xbf16, #tpu.memory_space<vmem>>, %arg3: memref<128x384xbf16, #tpu.memory_space<vmem>>, %arg4: memref<32x128xbf16, #tpu.memory_space<vmem>>, %arg5: memref<1x384xf32, #tpu.memory_space<vmem>>, %arg6: memref<32x128xf32, #tpu.memory_space<vmem>>) attributes {dimension_semantics = [#tpu.dimension_semantics<arbitrary>], iteration_bounds = array<i64: 1>, scalar_prefetch = 0 : i64, scratch_operands = 0 : i64, tpu.core_type = #tpu.core_type<tc>, window_params = [{pipeline_mode = #tpu.pipeline_mode<synchronous>, transform_indices = @transform_0, window_bounds = array<i64: 32, 128>}, {pipeline_mode = #tpu.pipeline_mode<synchronous>, transform_indices = @transform_1, window_bounds = array<i64: 32, 32>}, {pipeline_mode = #tpu.pipeline_mode<synchronous>, transform_indices = @transform_2, window_bounds = array<i64: 128, 384>}, {pipeline_mode = #tpu.pipeline_mode<synchronous>, transform_indices = @transform_3, window_bounds = array<i64: 32, 128>}, {pipeline_mode = #tpu.pipeline_mode<synchronous>, transform_indices = @transform_4, window_bounds = array<i64: 1, 384>}, {pipeline_mode = #tpu.pipeline_mode<synchronous>, transform_indices = @transform_5, window_bounds = array<i64: 32, 128>}]} {
    %c0 = arith.constant 0 : index
    %c0_0 = arith.constant 0 : index
    %0 = vector.load %arg1[%c0, %c0_0] : memref<32x128xf32, #tpu.memory_space<vmem>>, vector<32x128xf32>
    %1 = arith.truncf %0 : vector<32x128xf32> to vector<32x128xbf16>
    %c0_1 = arith.constant 0 : index
    %c0_2 = arith.constant 0 : index
    %2 = vector.load %arg2[%c0_1, %c0_2] : memref<32x32xbf16, #tpu.memory_space<vmem>>, vector<32x32xbf16>
    %c0_3 = arith.constant 0 : index
    %c0_4 = arith.constant 0 : index
    %3 = vector.load %arg3[%c0_3, %c0_4] : memref<128x384xbf16, #tpu.memory_space<vmem>>, vector<128x384xbf16>
    %c0_5 = arith.constant 0 : index
    %c0_6 = arith.constant 0 : index
    %4 = vector.load %arg4[%c0_5, %c0_6] : memref<32x128xbf16, #tpu.memory_space<vmem>>, vector<32x128xbf16>
    %c0_7 = arith.constant 0 : index
    %c0_8 = arith.constant 0 : index
    %5 = vector.load %arg5[%c0_7, %c0_8] : memref<1x384xf32, #tpu.memory_space<vmem>>, vector<1x384xf32>
    %cst = arith.constant dense<0.000000e+00> : vector<32x128xf32>
    %6 = tpu.matmul %2, %1, %cst {dimension_numbers = #tpu.dot_dimension_numbers<[1], [0], [0], [1], [0, 0, 1, 1], [], []>} : vector<32x32xbf16>, vector<32x128xbf16>, vector<32x128xf32> -> vector<32x128xf32>
    %7 = arith.truncf %6 : vector<32x128xf32> to vector<32x128xbf16>
    %cst_9 = arith.constant dense<0.000000e+00> : vector<32x384xf32>
    %8 = tpu.matmul %7, %3, %cst_9 {dimension_numbers = #tpu.dot_dimension_numbers<[1], [0], [0], [1], [0, 0, 1, 1], [], []>} : vector<32x128xbf16>, vector<128x384xbf16>, vector<32x384xf32> -> vector<32x384xf32>
    %9 = vector.broadcast %5 : vector<1x384xf32> to vector<32x384xf32>
    %10 = arith.addf %8, %9 : vector<32x384xf32>
    %11 = vector.extract_strided_slice %10 {offsets = [0, 0], sizes = [32, 32], strides = [1, 1]} : vector<32x384xf32> to vector<32x32xf32>
    %12 = arith.negf %11 : vector<32x32xf32>
    %13 = math.exp %12 : vector<32x32xf32>
    %cst_10 = arith.constant 1.000000e+00 : f32
    %14 = vector.broadcast %cst_10 : f32 to vector<32x32xf32>
    %15 = arith.addf %14, %13 : vector<32x32xf32>
    %16 = arith.divf %14, %15 : vector<32x32xf32>
    %17 = vector.extract_strided_slice %10 {offsets = [0, 128], sizes = [32, 128], strides = [1, 1]} : vector<32x384xf32> to vector<32x128xf32>
    %18 = arith.negf %17 : vector<32x128xf32>
    %19 = math.exp %18 : vector<32x128xf32>
    %cst_11 = arith.constant 1.000000e+00 : f32
    %20 = vector.broadcast %cst_11 : f32 to vector<32x128xf32>
    %21 = arith.addf %20, %19 : vector<32x128xf32>
    %22 = arith.divf %20, %21 : vector<32x128xf32>
    %23 = vector.extract_strided_slice %0 {offsets = [0, 0], sizes = [32, 32], strides = [1, 1]} : vector<32x128xf32> to vector<32x32xf32>
    %24 = arith.mulf %16, %23 : vector<32x32xf32>
    %25 = arith.truncf %24 : vector<32x32xf32> to vector<32x32xbf16>
    %cst_12 = arith.constant dense<0.000000e+00> : vector<32x32xf32>
    %26 = tpu.matmul %2, %25, %cst_12 {dimension_numbers = #tpu.dot_dimension_numbers<[1], [0], [0], [1], [0, 0, 1, 1], [], []>} : vector<32x32xbf16>, vector<32x32xbf16>, vector<32x32xf32> -> vector<32x32xf32>
    %27 = vector.extract_strided_slice %10 {offsets = [0, 256], sizes = [32, 128], strides = [1, 1]} : vector<32x384xf32> to vector<32x128xf32>
    %28 = arith.truncf %26 : vector<32x32xf32> to vector<32x32xbf16>
    %cst_13 = arith.constant dense<0.000000e+00> : vector<32x128xf32>
    %29 = tpu.matmul %28, %4, %cst_13 {dimension_numbers = #tpu.dot_dimension_numbers<[1], [0], [0], [1], [0, 0, 1, 1], [], []>} : vector<32x32xbf16>, vector<32x128xbf16>, vector<32x128xf32> -> vector<32x128xf32>
    %30 = arith.addf %27, %29 : vector<32x128xf32>
    %31 = math.tanh %30 : vector<32x128xf32>
    %32 = arith.mulf %22, %0 : vector<32x128xf32>
    %cst_14 = arith.constant 1.000000e+00 : f32
    %33 = vector.broadcast %cst_14 : f32 to vector<32x128xf32>
    %34 = arith.subf %33, %22 : vector<32x128xf32>
    %35 = arith.mulf %34, %31 : vector<32x128xf32>
    %36 = arith.addf %32, %35 : vector<32x128xf32>
    %c0_15 = arith.constant 0 : index
    %c0_16 = arith.constant 0 : index
    %37 = vector.load %arg6[%c0_15, %c0_16] : memref<32x128xf32, #tpu.memory_space<vmem>>, vector<32x128xf32>
    tpu.vector_store %arg6[%c0_15, %c0_16], %36 {strides = array<i32>} : memref<32x128xf32, #tpu.memory_space<vmem>>, vector<32x128xf32>,
    return
  }
  func.func @transform_0(%arg0: i32) -> (i32, i32) {
    %c0_i32 = arith.constant 0 : i32
    %c0_i32_0 = arith.constant 0 : i32
    %c0_i32_1 = arith.constant 0 : i32
    return %c0_i32, %c0_i32_0 : i32, i32
  }
  func.func @transform_1(%arg0: i32) -> (i32, i32) {
    %c0_i32 = arith.constant 0 : i32
    %c0_i32_0 = arith.constant 0 : i32
    %c0_i32_1 = arith.constant 0 : i32
    return %c0_i32, %c0_i32_0 : i32, i32
  }
  func.func @transform_2(%arg0: i32) -> (i32, i32) {
    %c0_i32 = arith.constant 0 : i32
    %c0_i32_0 = arith.constant 0 : i32
    %c0_i32_1 = arith.constant 0 : i32
    return %c0_i32, %c0_i32_0 : i32, i32
  }
  func.func @transform_3(%arg0: i32) -> (i32, i32) {
    %c0_i32 = arith.constant 0 : i32
    %c0_i32_0 = arith.constant 0 : i32
    %c0_i32_1 = arith.constant 0 : i32
    return %c0_i32, %c0_i32_0 : i32, i32
  }
  func.func @transform_4(%arg0: i32) -> (i32, i32) {
    %c0_i32 = arith.constant 0 : i32
    %c0_i32_0 = arith.constant 0 : i32
    %c0_i32_1 = arith.constant 0 : i32
    return %c0_i32, %c0_i32_0 : i32, i32
  }
  func.func @transform_5(%arg0: i32) -> (i32, i32) {
    %c0_i32 = arith.constant 0 : i32
    %c0_i32_0 = arith.constant 0 : i32
    %c0_i32_1 = arith.constant 0 : i32
    return %c0_i32, %c0_i32_0 : i32, i32
  }
}

</mosaic_0001>

<llo_original>
// kernel: tpu_custom_call.1
$region0: #{tpu_custom_call.1}
  #allocation0 [shape = 'u32[]', space=smem, size = 0x4, offset = 0x4, fixed_abs, tag = 'smem constant byte address 0x4 - core index']
  #allocation1 [shape = 'u32[144,128]{1,0:T(1,128)}', space=vmem, size = 0x12000, scoped, tag = 'internal scratch']
  %s0 = inlined_call_operand.hbm [shape: f32[32,128], index: 0, kind: input, shape index: {}]
  %s1 = inlined_call_operand.hbm [shape: bf16[32,32], index: 1, kind: input, shape index: {}]
  %s2 = inlined_call_operand.hbm [shape: bf16[128,384], index: 2, kind: input, shape index: {}]
  %s3 = inlined_call_operand.hbm [shape: bf16[32,128], index: 3, kind: input, shape index: {}]
  %s4 = inlined_call_operand.vmem [shape: f32[1,384], index: 4, kind: input, shape index: {}]
  %s5 = inlined_call_operand.hbm [shape: f32[32,128], index: 5, kind: output, shape index: {}]
  %s6 = sld [smem:[#allocation0]]
  $region46: #{tpu_custom_call.1} parent=0
    _
  %s8 = ssub.s32 1, %s6
  %s9 = scalar_select 0, %s8, %s6
  $region1: #{tpu_custom_call.1} parent=0
    #allocation2 [shape = 'u8[16384]{0}', space=vmem, size = 0x4000, scoped, tag = 'input window, operand 0, single buffered']
    #allocation3 [shape = 's32[1]{0}', space=sflag, size = 0x4, scoped, tag = 'scoped memory for tpu_custom_call.1']
    #allocation4 [shape = 's32[1]{0}', space=sflag, size = 0x4, scoped, tag = 'scoped memory for tpu_custom_call.1']
    #allocation5 [shape = 'u8[8192]{0}', space=vmem, size = 0x2000, scoped, tag = 'input window, operand 1, single buffered']
    #allocation6 [shape = 's32[1]{0}', space=sflag, size = 0x4, scoped, tag = 'scoped memory for tpu_custom_call.1']
    #allocation7 [shape = 'u8[98304]{0}', space=vmem, size = 0x18000, scoped, tag = 'input window, operand 2, single buffered']
    #allocation8 [shape = 'u8[8192]{0}', space=vmem, size = 0x2000, scoped, tag = 'input window, operand 3, single buffered']
    #allocation9 [shape = 's32[1]{0}', space=sflag, size = 0x4, scoped, tag = 'scoped memory for tpu_custom_call.1']
    #allocation10 [shape = 'u8[16384]{0}', space=vmem, size = 0x4000, scoped, tag = 'output window, operand 0, single buffered']
    %10 = vsyncpa [#allocation3], 0
    %11 = vsyncpa [#allocation6], 0
    %12 = vsyncpa [#allocation9], 0
    %13 = vsyncpa [#allocation4], 0
    // Predicated region
    $region2: #{tpu_custom_call.1} parent=1 // pred_check
      _
    $region3: #{tpu_custom_call.1} parent=1 // pred_check_branch
      %15 = sbr.rel (0) target = $region5
    $region4: #{tpu_custom_call.1} parent=1 // pred_region
      %s17 = ssub.s32 512, 512
      %18 = vsyncadd [#allocation3], %s17
      %s19 = sshll.u32 [#allocation2], 4
      %s20 = int_to_ptr.vmem [resolvable:$true] %s19
      %25 = dma.hbm_to_vmem [thread:$0]  %s0, 512, %s20, [#allocation3], 128, 128, 8
    $region5: #{tpu_custom_call.1} parent=1 // pred_fallthru
      _
    // Predicated region
    $region6: #{tpu_custom_call.1} parent=1 // pred_check
      _
    $region7: #{tpu_custom_call.1} parent=1 // pred_check_branch
      %27 = sbr.rel (0) target = $region9
    $region8: #{tpu_custom_call.1} parent=1 // pred_region
      %s29 = ssub.s32 256, 256
      %30 = vsyncadd [#allocation6], %s29
      %s31 = sshll.u32 [#allocation5], 4
      %s32 = int_to_ptr.vmem [resolvable:$true] %s31
      %37 = dma.hbm_to_vmem [thread:$0]  %s1, 256, %s32, [#allocation6], 64, 64, 4
    $region9: #{tpu_custom_call.1} parent=1 // pred_fallthru
      _
    // Predicated region
    $region10: #{tpu_custom_call.1} parent=1 // pred_check
      _
    $region11: #{tpu_custom_call.1} parent=1 // pred_check_branch
      %39 = sbr.rel (0) target = $region13
    $region12: #{tpu_custom_call.1} parent=1 // pred_region
      %s41 = ssub.s32 3072, 3072
      %42 = vsyncadd [#allocation6], %s41
      %s43 = sshll.u32 [#allocation7], 4
      %s44 = int_to_ptr.vmem [resolvable:$true] %s43
      %49 = dma.hbm_to_vmem [thread:$0]  %s2, 3072, %s44, [#allocation6], 192, 192, 12
    $region13: #{tpu_custom_call.1} parent=1 // pred_fallthru
      _
    // Predicated region
    $region14: #{tpu_custom_call.1} parent=1 // pred_check
      _
    $region15: #{tpu_custom_call.1} parent=1 // pred_check_branch
      %51 = sbr.rel (0) target = $region17
    $region16: #{tpu_custom_call.1} parent=1 // pred_region
      %s53 = ssub.s32 256, 256
      %54 = vsyncadd [#allocation9], %s53
      %s55 = sshll.u32 [#allocation8], 4
      %s56 = int_to_ptr.vmem [resolvable:$true] %s55
      %61 = dma.hbm_to_vmem [thread:$0]  %s3, 256, %s56, [#allocation9], 64, 64, 4
    $region17: #{tpu_custom_call.1} parent=1 // pred_fallthru
      _
    // Predicated region
    $region18: #{tpu_custom_call.1} parent=1 // pred_check
      _
    $region19: #{tpu_custom_call.1} parent=1 // pred_check_branch
      %63 = sbr.rel (0) target = $region21
    $region20: #{tpu_custom_call.1} parent=1 // pred_region
      _
    $region21: #{tpu_custom_call.1} parent=1 // pred_fallthru
      _
    // Predicated region
    $region22: #{tpu_custom_call.1} parent=1 // pred_check
      _
    $region23: #{tpu_custom_call.1} parent=1 // pred_check_branch
      %65 = sbr.rel (0) target = $region25
    $region24: #{tpu_custom_call.1} parent=1 // pred_region
      %66 = dma.done [#allocation3], 512
    $region25: #{tpu_custom_call.1} parent=1 // pred_fallthru
      _
    // Predicated region
    $region26: #{tpu_custom_call.1} parent=1 // pred_check
      _
    $region27: #{tpu_custom_call.1} parent=1 // pred_check_branch
      %68 = sbr.rel (0) target = $region29
    $region28: #{tpu_custom_call.1} parent=1 // pred_region
      %69 = dma.done [#allocation6], 256
    $region29: #{tpu_custom_call.1} parent=1 // pred_fallthru
      _
    // Predicated region
    $region30: #{tpu_custom_call.1} parent=1 // pred_check
      _
    $region31: #{tpu_custom_call.1} parent=1 // pred_check_branch
      %71 = sbr.rel (0) target = $region33
    $region32: #{tpu_custom_call.1} parent=1 // pred_region
      %72 = dma.done [#allocation6], 3072
    $region33: #{tpu_custom_call.1} parent=1 // pred_fallthru
      _
    // Predicated region
    $region34: #{tpu_custom_call.1} parent=1 // pred_check
      _
    $region35: #{tpu_custom_call.1} parent=1 // pred_check_branch
      %74 = sbr.rel (0) target = $region37
    $region36: #{tpu_custom_call.1} parent=1 // pred_region
      %75 = dma.done [#allocation9], 256
    $region37: #{tpu_custom_call.1} parent=1 // pred_fallthru
      _
    %v77 = vld [vmem:[#allocation2] sm:$0xff]
    %v78 = vld [vmem:[#allocation2 + $0x8] sm:$0xff]
    %v79 = vld [vmem:[#allocation2 + $0x10] sm:$0xff]
    %v80 = vld [vmem:[#allocation2 + $0x18] sm:$0xff]
    %v81 = vpack.c.bf16 %v78, %v77
    %v82 = vpack.c.bf16 %v80, %v79
    %v83 = vld [vmem:[#allocation5] sm:$0xf]
    %v84 = vld [vmem:[#allocation5 + $0x4] sm:$0xf]
    %v85 = vld [vmem:[#allocation5 + $0x8] sm:$0xf]
    %v86 = vld [vmem:[#allocation5 + $0xc] sm:$0xf]
    %v87 = vld [vmem:[#allocation7] sm:$0xff]
    %v88 = vld [vmem:[#allocation7 + $0x8] sm:$0xf]
    %v89 = vld [vmem:[#allocation7 + $0xc] sm:$0xff]
    %v90 = vld [vmem:[#allocation7 + $0x14] sm:$0xf]
    %v91 = vld [vmem:[#allocation7 + $0x18] sm:$0xff]
    %v92 = vld [vmem:[#allocation7 + $0x20] sm:$0xf]
    %v93 = vld [vmem:[#allocation7 + $0x24] sm:$0xff]
    %v94 = vld [vmem:[#allocation7 + $0x2c] sm:$0xf]
    %v95 = vld [vmem:[#allocation7 + $0x30] sm:$0xff]
    %v96 = vld [vmem:[#allocation7 + $0x38] sm:$0xf]
    %v97 = vld [vmem:[#allocation7 + $0x3c] sm:$0xff]
    %v98 = vld [vmem:[#allocation7 + $0x44] sm:$0xf]
    %v99 = vld [vmem:[#allocation7 + $0x48] sm:$0xff]
    %v100 = vld [vmem:[#allocation7 + $0x50] sm:$0xf]
    %v101 = vld [vmem:[#allocation7 + $0x54] sm:$0xff]
    %v102 = vld [vmem:[#allocation7 + $0x5c] sm:$0xf]
    %v103 = vld [vmem:[#allocation7 + $0x60] sm:$0xff]
    %v104 = vld [vmem:[#allocation7 + $0x68] sm:$0xf]
    %v105 = vld [vmem:[#allocation7 + $0x6c] sm:$0xff]
    %v106 = vld [vmem:[#allocation7 + $0x74] sm:$0xf]
    %v107 = vld [vmem:[#allocation7 + $0x78] sm:$0xff]
    %v108 = vld [vmem:[#allocation7 + $0x80] sm:$0xf]
    %v109 = vld [vmem:[#allocation7 + $0x84] sm:$0xff]
    %v110 = vld [vmem:[#allocation7 + $0x8c] sm:$0xf]
    %v111 = vld [vmem:[#allocation7 + $0x90] sm:$0xff]
    %v112 = vld [vmem:[#allocation7 + $0x98] sm:$0xf]
    %v113 = vld [vmem:[#allocation7 + $0x9c] sm:$0xff]
    %v114 = vld [vmem:[#allocation7 + $0xa4] sm:$0xf]
    %v115 = vld [vmem:[#allocation7 + $0xa8] sm:$0xff]
    %v116 = vld [vmem:[#allocation7 + $0xb0] sm:$0xf]
    %v117 = vld [vmem:[#allocation7 + $0xb4] sm:$0xff]
    %v118 = vld [vmem:[#allocation7 + $0xbc] sm:$0xf]
    %v119 = vld [vmem:[#allocation8] sm:$0xf]
    %v120 = vld [vmem:[#allocation8 + $0x4] sm:$0xf]
    %v121 = vld [vmem:[#allocation8 + $0x8] sm:$0xf]
    %v122 = vld [vmem:[#allocation8 + $0xc] sm:$0xf]
    %v123 = vld [vmem:[%s4] sm:$0x7]
    %v128 = vunpack.c.l.b16 %v83
    %v129 = vunpack.c.l.b16 %v84
    %v130 = vunpack.c.l.b16 %v85
    %v131 = vunpack.c.l.b16 %v86
    %v132 = vpack.c.b16 %v129, %v128
    %v133 = vpack.c.b16 %v131, %v130
    %vm134 = vcmask 261120
    %v136 = vsel %vm134, %v132, 0
    %v139 = vsel %vm134, %v133, 0
    %141 = vmatprep.subr.bf16.mxu0 0
    %142 = vmatpush1.bf16.msra.mxu0 %v81
    %143 = vmatprep.subr.bf16.mxu0 0
    %144 = vmatpush1.bf16.msra.mxu0 %v82
    %145 = vmatprep.subr.bf16.mxu0 0
    %146 = vmatpush1.bf16.msra.mxu0 0
    %147 = vmatprep.subr.bf16.mxu0 0
    %148 = vmatpush1.bf16.msra.mxu0 0
    %149 = vmatprep.subr.bf16.mxu0 0
    %150 = vmatpush1.bf16.msra.mxu0 0
    %151 = vmatprep.subr.bf16.mxu0 0
    %152 = vmatpush1.bf16.msra.mxu0 0
    %153 = vmatprep.subr.bf16.mxu0 0
    %154 = vmatpush1.bf16.msra.mxu0 0
    %155 = vmatprep.subr.bf16.mxu0 0
    %156 = vmatpush1.bf16.msra.mxu0 0
    %157 = vmatprep.subr.bf16.mxu0 0
    %158 = vmatpush1.bf16.msra.mxu0 0
    %159 = vmatprep.subr.bf16.mxu0 0
    %160 = vmatpush1.bf16.msra.mxu0 0
    %161 = vmatprep.subr.bf16.mxu0 0
    %162 = vmatpush1.bf16.msra.mxu0 0
    %163 = vmatprep.subr.bf16.mxu0 0
    %164 = vmatpush1.bf16.msra.mxu0 0
    %165 = vmatprep.subr.bf16.mxu0 0
    %166 = vmatpush1.bf16.msra.mxu0 0
    %167 = vmatprep.subr.bf16.mxu0 0
    %168 = vmatpush1.bf16.msra.mxu0 0
    %169 = vmatprep.subr.bf16.mxu0 0
    %170 = vmatpush1.bf16.msra.mxu0 0
    %171 = vmatprep.subr.bf16.mxu0 0
    %172 = vmatpush1.bf16.msra.mxu0 0
    %173 = vmatprep.mubr.bf16.mxu0 0
    %174 = vmatmul.mubr.bf16.gmra.mrb[0].mxu0 %v136
    %v175 = vpop.f32.mrb[0].mxu0
    %v176 = vadd.f32 0.0, %v175
    %v177 = vpop.f32.mrb[0].mxu0
    %v178 = vpop.f32.mrb[0].mxu0
    %v179 = vadd.f32 0.0, %v178
    %v180 = vpop.f32.mrb[0].mxu0
    %181 = vmatprep.mubr.bf16.mxu0 0
    %182 = vmatmul.mubr.bf16.gmra.mrb[0].mxu0 %v139
    %v183 = vpop.f32.mrb[0].mxu0
    %v184 = vadd.f32 0.0, %v183
    %v185 = vpop.f32.mrb[0].mxu0
    %v186 = vpop.f32.mrb[0].mxu0
    %v187 = vadd.f32 0.0, %v186
    %v188 = vpop.f32.mrb[0].mxu0
    %189 = vdwg.mxu0
    %v190 = vpack.c.bf16 %v179, %v176
    %v191 = vpack.c.bf16 %v187, %v184
    %v193 = vlaneseq
    %v194 = vshrl.u32 %v193, 7
    %v195 = vsub.s32 0, %v194
    %v196 = vrot.slane %v123, %v195
    %v197 = vlaneseq
    %v198 = vshrl.u32 %v197, 7
    %v199 = vsub.s32 1, %v198
    %v200 = vrot.slane %v123, %v199
    %v201 = vlaneseq
    %v202 = vshrl.u32 %v201, 7
    %v203 = vsub.s32 2, %v202
    %v204 = vrot.slane %v123, %v203
    %v240 = vunpack.c.l.b16 %v87
    %v241 = vunpack.c.h.b16 %v87
    %v242 = vunpack.c.l.b16 %v88
    %v243 = vunpack.c.l.b16 %v89
    %v244 = vunpack.c.h.b16 %v89
    %v245 = vunpack.c.l.b16 %v90
    %v246 = vunpack.c.l.b16 %v91
    %v247 = vunpack.c.h.b16 %v91
    %v248 = vunpack.c.l.b16 %v92
    %v249 = vunpack.c.l.b16 %v93
    %v250 = vunpack.c.h.b16 %v93
    %v251 = vunpack.c.l.b16 %v94
    %v252 = vunpack.c.l.b16 %v95
    %v253 = vunpack.c.h.b16 %v95
    %v254 = vunpack.c.l.b16 %v96
    %v255 = vunpack.c.l.b16 %v97
    %v256 = vunpack.c.h.b16 %v97
    %v257 = vunpack.c.l.b16 %v98
    %v258 = vunpack.c.l.b16 %v99
    %v259 = vunpack.c.h.b16 %v99
    %v260 = vunpack.c.l.b16 %v100
    %v261 = vunpack.c.l.b16 %v101
    %v262 = vunpack.c.h.b16 %v101
    %v263 = vunpack.c.l.b16 %v102
    %v264 = vunpack.c.l.b16 %v103
    %v265 = vunpack.c.h.b16 %v103
    %v266 = vunpack.c.l.b16 %v104
    %v267 = vunpack.c.l.b16 %v105
    %v268 = vunpack.c.h.b16 %v105
    %v269 = vunpack.c.l.b16 %v106
    %v270 = vunpack.c.l.b16 %v107
    %v271 = vunpack.c.h.b16 %v107
    %v272 = vunpack.c.l.b16 %v108
    %v273 = vunpack.c.l.b16 %v109
    %v274 = vunpack.c.h.b16 %v109
    %v275 = vunpack.c.l.b16 %v110
    %v276 = vunpack.c.l.b16 %v111
    %v277 = vunpack.c.h.b16 %v111
    %v278 = vunpack.c.l.b16 %v112
    %v279 = vunpack.c.l.b16 %v113
    %v280 = vunpack.c.h.b16 %v113
    %v281 = vunpack.c.l.b16 %v114
    %v282 = vunpack.c.l.b16 %v115
    %v283 = vunpack.c.h.b16 %v115
    %v284 = vunpack.c.l.b16 %v116
    %v285 = vunpack.c.l.b16 %v117
    %v286 = vunpack.c.h.b16 %v117
    %v287 = vunpack.c.l.b16 %v118
    %v288 = vpack.c.b16 %v243, %v240
    %v289 = vpack.c.b16 %v244, %v241
    %v290 = vpack.c.b16 %v245, %v242
    %v291 = vpack.c.b16 %v249, %v246
    %v292 = vpack.c.b16 %v250, %v247
    %v293 = vpack.c.b16 %v251, %v248
    %v294 = vpack.c.b16 %v255, %v252
    %v295 = vpack.c.b16 %v256, %v253
    %v296 = vpack.c.b16 %v257, %v254
    %v297 = vpack.c.b16 %v261, %v258
    %v298 = vpack.c.b16 %v262, %v259
    %v299 = vpack.c.b16 %v263, %v260
    %v300 = vpack.c.b16 %v267, %v264
    %v301 = vpack.c.b16 %v268, %v265
    %v302 = vpack.c.b16 %v269, %v266
    %v303 = vpack.c.b16 %v273, %v270
    %v304 = vpack.c.b16 %v274, %v271
    %v305 = vpack.c.b16 %v275, %v272
    %v306 = vpack.c.b16 %v279, %v276
    %v307 = vpack.c.b16 %v280, %v277
    %v308 = vpack.c.b16 %v281, %v278
    %v309 = vpack.c.b16 %v285, %v282
    %v310 = vpack.c.b16 %v286, %v283
    %v311 = vpack.c.b16 %v287, %v284
    %336 = vmatprep.subr.bf16.mxu0 %v289
    %337 = vmatpush1.bf16.msra.mxu0 %v288
    %338 = vmatprep.subr.bf16.mxu0 %v292
    %339 = vmatpush1.bf16.msra.mxu0 %v291
    %340 = vmatprep.subr.bf16.mxu0 %v295
    %341 = vmatpush1.bf16.msra.mxu0 %v294
    %342 = vmatprep.subr.bf16.mxu0 %v298
    %343 = vmatpush1.bf16.msra.mxu0 %v297
    %344 = vmatprep.subr.bf16.mxu0 %v301
    %345 = vmatpush1.bf16.msra.mxu0 %v300
    %346 = vmatprep.subr.bf16.mxu0 %v304
    %347 = vmatpush1.bf16.msra.mxu0 %v303
    %348 = vmatprep.subr.bf16.mxu0 %v307
    %349 = vmatpush1.bf16.msra.mxu0 %v306
    %350 = vmatprep.subr.bf16.mxu0 %v310
    %351 = vmatpush1.bf16.msra.mxu0 %v309
    %352 = vmatprep.subr.bf16.mxu0 0
    %353 = vmatpush1.bf16.msra.mxu0 0
    %354 = vmatprep.subr.bf16.mxu0 0
    %355 = vmatpush1.bf16.msra.mxu0 0
    %356 = vmatprep.subr.bf16.mxu0 0
    %357 = vmatpush1.bf16.msra.mxu0 0
    %358 = vmatprep.subr.bf16.mxu0 0
    %359 = vmatpush1.bf16.msra.mxu0 0
    %360 = vmatprep.subr.bf16.mxu0 0
    %361 = vmatpush1.bf16.msra.mxu0 0
    %362 = vmatprep.subr.bf16.mxu0 0
    %363 = vmatpush1.bf16.msra.mxu0 0
    %364 = vmatprep.subr.bf16.mxu0 0
    %365 = vmatpush1.bf16.msra.mxu0 0
    %366 = vmatprep.subr.bf16.mxu0 0
    %367 = vmatpush1.bf16.msra.mxu0 0
    %368 = vmatprep.mubr.bf16.mxu0 0
    %369 = vmatmul.mubr.bf16.gmra.mrb[0].mxu0 %v190
    %v370 = vpop.f32.mrb[0].mxu0
    %v371 = vadd.f32 %v196, %v370
    %v372 = vpop.f32.mrb[0].mxu0
    %v373 = vadd.f32 %v200, %v372
    %v374 = vpop.f32.mrb[0].mxu0
    %v375 = vadd.f32 %v196, %v374
    %v376 = vpop.f32.mrb[0].mxu0
    %v377 = vadd.f32 %v200, %v376
    %378 = vmatprep.mubr.bf16.mxu0 0
    %379 = vmatmul.mubr.bf16.gmra.mrb[0].mxu0 %v191
    %v380 = vpop.f32.mrb[0].mxu0
    %v381 = vadd.f32 %v196, %v380
    %v382 = vpop.f32.mrb[0].mxu0
    %v383 = vadd.f32 %v200, %v382
    %v384 = vpop.f32.mrb[0].mxu0
    %v385 = vadd.f32 %v196, %v384
    %v386 = vpop.f32.mrb[0].mxu0
    %v387 = vadd.f32 %v200, %v386
    %388 = vdwg.mxu0
    %389 = vmatprep.subr.bf16.mxu0 0
    %390 = vmatpush1.bf16.msra.mxu0 %v290
    %391 = vmatprep.subr.bf16.mxu0 0
    %392 = vmatpush1.bf16.msra.mxu0 %v293
    %393 = vmatprep.subr.bf16.mxu0 0
    %394 = vmatpush1.bf16.msra.mxu0 %v296
    %395 = vmatprep.subr.bf16.mxu0 0
    %396 = vmatpush1.bf16.msra.mxu0 %v299
    %397 = vmatprep.subr.bf16.mxu0 0
    %398 = vmatpush1.bf16.msra.mxu0 %v302
    %399 = vmatprep.subr.bf16.mxu0 0
    %400 = vmatpush1.bf16.msra.mxu0 %v305
    %401 = vmatprep.subr.bf16.mxu0 0
    %402 = vmatpush1.bf16.msra.mxu0 %v308
    %403 = vmatprep.subr.bf16.mxu0 0
    %404 = vmatpush1.bf16.msra.mxu0 %v311
    %405 = vmatprep.subr.bf16.mxu0 0
    %406 = vmatpush1.bf16.msra.mxu0 0
    %407 = vmatprep.subr.bf16.mxu0 0
    %408 = vmatpush1.bf16.msra.mxu0 0
    %409 = vmatprep.subr.bf16.mxu0 0
    %410 = vmatpush1.bf16.msra.mxu0 0
    %411 = vmatprep.subr.bf16.mxu0 0
    %412 = vmatpush1.bf16.msra.mxu0 0
    %413 = vmatprep.subr.bf16.mxu0 0
    %414 = vmatpush1.bf16.msra.mxu0 0
    %415 = vmatprep.subr.bf16.mxu0 0
    %416 = vmatpush1.bf16.msra.mxu0 0
    %417 = vmatprep.subr.bf16.mxu0 0
    %418 = vmatpush1.bf16.msra.mxu0 0
    %419 = vmatprep.subr.bf16.mxu0 0
    %420 = vmatpush1.bf16.msra.mxu0 0
    %421 = vmatprep.mubr.bf16.mxu0 0
    %422 = vmatmul.mubr.bf16.gmra.mrb[0].mxu0 %v190
    %v423 = vpop.f32.mrb[0].mxu0
    %v424 = vadd.f32 %v204, %v423
    %v425 = vpop.f32.mrb[0].mxu0
    %v426 = vpop.f32.mrb[0].mxu0
    %v427 = vadd.f32 %v204, %v426
    %v428 = vpop.f32.mrb[0].mxu0
    %429 = vmatprep.mubr.bf16.mxu0 0
    %430 = vmatmul.mubr.bf16.gmra.mrb[0].mxu0 %v191
    %v431 = vpop.f32.mrb[0].mxu0
    %v432 = vadd.f32 %v204, %v431
    %v433 = vpop.f32.mrb[0].mxu0
    %v434 = vpop.f32.mrb[0].mxu0
    %v435 = vadd.f32 %v204, %v434
    %v436 = vpop.f32.mrb[0].mxu0
    %437 = vdwg.mxu0
    %v438 = vxor.u32 %v371, 2147483648
    %v439 = vxor.u32 %v375, 2147483648
    %v440 = vxor.u32 %v381, 2147483648
    %v441 = vxor.u32 %v385, 2147483648
    %v442 = vmul.f32 %v438, 1.442695
    %v443 = vpow.pop %v442
    %v444 = vmul.f32 %v439, 1.442695
    %v445 = vpow.pop %v444
    %v446 = vmul.f32 %v440, 1.442695
    %v447 = vpow.pop %v446
    %v448 = vmul.f32 %v441, 1.442695
    %v449 = vpow.pop %v448
    %v450 = vadd.f32 %v443, 1.0
    %v451 = vadd.f32 %v445, 1.0
    %v452 = vadd.f32 %v447, 1.0
    %v453 = vadd.f32 %v449, 1.0
    %v454 = vrcp.pop %v450
    %v455 = vmul.f32 1.0, %v454
    %v456 = vrcp.pop %v451
    %v457 = vmul.f32 1.0, %v456
    %v458 = vrcp.pop %v452
    %v459 = vmul.f32 1.0, %v458
    %v460 = vrcp.pop %v453
    %v461 = vmul.f32 1.0, %v460
    %v462 = vxor.u32 %v373, 2147483648
    %v463 = vxor.u32 %v377, 2147483648
    %v464 = vxor.u32 %v383, 2147483648
    %v465 = vxor.u32 %v387, 2147483648
    %v466 = vmul.f32 %v462, 1.442695
    %v467 = vpow.pop %v466
    %v468 = vmul.f32 %v463, 1.442695
    %v469 = vpow.pop %v468
    %v470 = vmul.f32 %v464, 1.442695
    %v471 = vpow.pop %v470
    %v472 = vmul.f32 %v465, 1.442695
    %v473 = vpow.pop %v472
    %v474 = vadd.f32 %v467, 1.0
    %v475 = vadd.f32 %v469, 1.0
    %v476 = vadd.f32 %v471, 1.0
    %v477 = vadd.f32 %v473, 1.0
    %v478 = vrcp.pop %v474
    %v479 = vmul.f32 1.0, %v478
    %v480 = vrcp.pop %v475
    %v481 = vmul.f32 1.0, %v480
    %v482 = vrcp.pop %v476
    %v483 = vmul.f32 1.0, %v482
    %v484 = vrcp.pop %v477
    %v485 = vmul.f32 1.0, %v484
    %v486 = vmul.f32 %v455, %v77
    %v487 = vmul.f32 %v457, %v78
    %v488 = vmul.f32 %v459, %v79
    %v489 = vmul.f32 %v461, %v80
    %v490 = vpack.c.bf16 %v487, %v486
    %v491 = vpack.c.bf16 %v489, %v488
    %492 = vmatprep.subr.bf16.mxu0 0
    %493 = vmatpush1.bf16.msra.mxu0 %v490
    %494 = vmatprep.subr.bf16.mxu0 0
    %495 = vmatpush1.bf16.msra.mxu0 %v491
    %496 = vmatprep.subr.bf16.mxu0 0
    %497 = vmatpush1.bf16.msra.mxu0 0
    %498 = vmatprep.subr.bf16.mxu0 0
    %499 = vmatpush1.bf16.msra.mxu0 0
    %500 = vmatprep.subr.bf16.mxu0 0
    %501 = vmatpush1.bf16.msra.mxu0 0
    %502 = vmatprep.subr.bf16.mxu0 0
    %503 = vmatpush1.bf16.msra.mxu0 0
    %504 = vmatprep.subr.bf16.mxu0 0
    %505 = vmatpush1.bf16.msra.mxu0 0
    %506 = vmatprep.subr.bf16.mxu0 0
    %507 = vmatpush1.bf16.msra.mxu0 0
    %508 = vmatprep.subr.bf16.mxu0 0
    %509 = vmatpush1.bf16.msra.mxu0 0
    %510 = vmatprep.subr.bf16.mxu0 0
    %511 = vmatpush1.bf16.msra.mxu0 0
    %512 = vmatprep.subr.bf16.mxu0 0
    %513 = vmatpush1.bf16.msra.mxu0 0
    %514 = vmatprep.subr.bf16.mxu0 0
    %515 = vmatpush1.bf16.msra.mxu0 0
    %516 = vmatprep.subr.bf16.mxu0 0
    %517 = vmatpush1.bf16.msra.mxu0 0
    %518 = vmatprep.subr.bf16.mxu0 0
    %519 = vmatpush1.bf16.msra.mxu0 0
    %520 = vmatprep.subr.bf16.mxu0 0
    %521 = vmatpush1.bf16.msra.mxu0 0
    %522 = vmatprep.subr.bf16.mxu0 0
    %523 = vmatpush1.bf16.msra.mxu0 0
    %524 = vmatprep.mubr.bf16.mxu0 0
    %525 = vmatmul.mubr.bf16.gmra.mrb[0].mxu0 %v136
    %v526 = vpop.f32.mrb[0].mxu0
    %v527 = vadd.f32 0.0, %v526
    %v528 = vpop.f32.mrb[0].mxu0
    %v529 = vpop.f32.mrb[0].mxu0
    %v530 = vadd.f32 0.0, %v529
    %v531 = vpop.f32.mrb[0].mxu0
    %532 = vmatprep.mubr.bf16.mxu0 0
    %533 = vmatmul.mubr.bf16.gmra.mrb[0].mxu0 %v139
    %v534 = vpop.f32.mrb[0].mxu0
    %v535 = vadd.f32 0.0, %v534
    %v536 = vpop.f32.mrb[0].mxu0
    %v537 = vpop.f32.mrb[0].mxu0
    %v538 = vadd.f32 0.0, %v537
    %v539 = vpop.f32.mrb[0].mxu0
    %540 = vdwg.mxu0
    %v541 = vpack.c.bf16 %v530, %v527
    %v542 = vpack.c.bf16 %v538, %v535
    %v547 = vunpack.c.l.b16 %v119
    %v548 = vunpack.c.l.b16 %v120
    %v549 = vunpack.c.l.b16 %v121
    %v550 = vunpack.c.l.b16 %v122
    %v551 = vpack.c.b16 %v548, %v547
    %v552 = vpack.c.b16 %v550, %v549
    %v556 = vsel %vm134, %v541, 0
    %v559 = vsel %vm134, %v542, 0
    %561 = vmatprep.subr.bf16.mxu0 0
    %562 = vmatpush1.bf16.msra.mxu0 %v551
    %563 = vmatprep.subr.bf16.mxu0 0
    %564 = vmatpush1.bf16.msra.mxu0 %v552
    %565 = vmatprep.subr.bf16.mxu0 0
    %566 = vmatpush1.bf16.msra.mxu0 0
    %567 = vmatprep.subr.bf16.mxu0 0
    %568 = vmatpush1.bf16.msra.mxu0 0
    %569 = vmatprep.subr.bf16.mxu0 0
    %570 = vmatpush1.bf16.msra.mxu0 0
    %571 = vmatprep.subr.bf16.mxu0 0
    %572 = vmatpush1.bf16.msra.mxu0 0
    %573 = vmatprep.subr.bf16.mxu0 0
    %574 = vmatpush1.bf16.msra.mxu0 0
    %575 = vmatprep.subr.bf16.mxu0 0
    %576 = vmatpush1.bf16.msra.mxu0 0
    %577 = vmatprep.subr.bf16.mxu0 0
    %578 = vmatpush1.bf16.msra.mxu0 0
    %579 = vmatprep.subr.bf16.mxu0 0
    %580 = vmatpush1.bf16.msra.mxu0 0
    %581 = vmatprep.subr.bf16.mxu0 0
    %582 = vmatpush1.bf16.msra.mxu0 0
    %583 = vmatprep.subr.bf16.mxu0 0
    %584 = vmatpush1.bf16.msra.mxu0 0
    %585 = vmatprep.subr.bf16.mxu0 0
    %586 = vmatpush1.bf16.msra.mxu0 0
    %587 = vmatprep.subr.bf16.mxu0 0
    %588 = vmatpush1.bf16.msra.mxu0 0
    %589 = vmatprep.subr.bf16.mxu0 0
    %590 = vmatpush1.bf16.msra.mxu0 0
    %591 = vmatprep.subr.bf16.mxu0 0
    %592 = vmatpush1.bf16.msra.mxu0 0
    %593 = vmatprep.mubr.bf16.mxu0 0
    %594 = vmatmul.mubr.bf16.gmra.mrb[0].mxu0 %v556
    %v595 = vpop.f32.mrb[0].mxu0
    %v596 = vadd.f32 0.0, %v595
    %v597 = vpop.f32.mrb[0].mxu0
    %v598 = vpop.f32.mrb[0].mxu0
    %v599 = vadd.f32 0.0, %v598
    %v600 = vpop.f32.mrb[0].mxu0
    %601 = vmatprep.mubr.bf16.mxu0 0
    %602 = vmatmul.mubr.bf16.gmra.mrb[0].mxu0 %v559
    %v603 = vpop.f32.mrb[0].mxu0
    %v604 = vadd.f32 0.0, %v603
    %v605 = vpop.f32.mrb[0].mxu0
    %v606 = vpop.f32.mrb[0].mxu0
    %v607 = vadd.f32 0.0, %v606
    %v608 = vpop.f32.mrb[0].mxu0
    %609 = vdwg.mxu0
    %v610 = vadd.f32 %v424, %v596
    %v611 = vadd.f32 %v427, %v599
    %v612 = vadd.f32 %v432, %v604
    %v613 = vadd.f32 %v435, %v607
    %v614 = vtanh.pop %v610
    %v615 = vtanh.pop %v611
    %v616 = vtanh.pop %v612
    %v617 = vtanh.pop %v613
    %v618 = vmul.f32 %v479, %v77
    %v619 = vmul.f32 %v481, %v78
    %v620 = vmul.f32 %v483, %v79
    %v621 = vmul.f32 %v485, %v80
    %v622 = vsub.f32 1.0, %v479
    %v623 = vsub.f32 1.0, %v481
    %v624 = vsub.f32 1.0, %v483
    %v625 = vsub.f32 1.0, %v485
    %v626 = vmul.f32 %v622, %v614
    %v627 = vmul.f32 %v623, %v615
    %v628 = vmul.f32 %v624, %v616
    %v629 = vmul.f32 %v625, %v617
    %v630 = vadd.f32 %v618, %v626
    %v631 = vadd.f32 %v619, %v627
    %v632 = vadd.f32 %v620, %v628
    %v633 = vadd.f32 %v621, %v629
    %634 = vst [vmem:[#allocation10] sm:$0xff] %v630
    %635 = vst [vmem:[#allocation10 + $0x8] sm:$0xff] %v631
    %636 = vst [vmem:[#allocation10 + $0x10] sm:$0xff] %v632
    %637 = vst [vmem:[#allocation10 + $0x18] sm:$0xff] %v633
    // Predicated region
    $region38: #{tpu_custom_call.1} parent=1 // pred_check
      _
    $region39: #{tpu_custom_call.1} parent=1 // pred_check_branch
      %639 = sbr.rel (0) target = $region41
    $region40: #{tpu_custom_call.1} parent=1 // pred_region
      %s641 = ssub.s32 512, 512
      %642 = vsyncadd [#allocation4], %s641
      %s643 = sshll.u32 [#allocation10], 4
      %s644 = int_to_ptr.vmem [resolvable:$true] %s643
      %649 = dma.vmem_to_hbm [thread:$0]  %s644, 512, %s5, [#allocation4], 128, 128, 8
    $region41: #{tpu_custom_call.1} parent=1 // pred_fallthru
      _
    // Predicated region
    $region42: #{tpu_custom_call.1} parent=1 // pred_check
      _
    $region43: #{tpu_custom_call.1} parent=1 // pred_check_branch
      %651 = sbr.rel (0) target = $region45
    $region44: #{tpu_custom_call.1} parent=1 // pred_region
      %652 = dma.done [#allocation4], 512
    $region45: #{tpu_custom_call.1} parent=1 // pred_fallthru
      _
    %653 = vsyncpa [#allocation3], 1
    %654 = vsyncpa [#allocation6], 1
    %655 = vsyncpa [#allocation9], 1
    %656 = vsyncpa [#allocation4], 1

</llo_original>
